<compile_context>
chip_gen: v5e
topology: v5e:2x2
jax: 0.10.0
libtpu: 0.0.40
codegen_flags: <defaults>
</compile_context>

<pallas_src>
import functools

import jax
import jax.numpy as jnp
from jax import lax
from jax.experimental import pallas as pl
from jax.experimental.pallas import tpu as pltpu

_EPSILON = 1e-6
_LANES = 128
_MAX_TILE_ROWS = 4096  # (4096, 128) f32 block = 2 MiB; 2 inputs x 2 bufs = 8 MiB resident.


def _make_charbonnier_kernel(eps2: float, tile_rows: int, valid_rows_last: int,
                             acc_rows: int):
    """All arguments are Python scalars so nothing is captured as a traced constant."""
    needs_mask = valid_rows_last != tile_rows

    def _accumulate(acc_ref, vals):
        if acc_rows == 1:
            acc_ref[...] += jnp.sum(vals, axis=0, keepdims=True)
        else:
            # (tile_rows,128) -> (tile_rows//8, 8, 128): splits the sublane-major axis
            # along (8,128) tile boundaries, so the reshape is free; the axis-0 sum is
            # pure VPU vreg adds (no per-step cross-sublane XLU reduce).
            acc_ref[...] += jnp.sum(
                vals.reshape(tile_rows // acc_rows, acc_rows, _LANES), axis=0)

    def kernel(pred_ref, targ_ref, out_ref, acc_ref):
        i = pl.program_id(0)
        last = pl.num_programs(0) - 1

        @pl.when(i == 0)
        def _():
            acc_ref[...] = jnp.zeros_like(acc_ref)

        # Upcast in-kernel (inputs may be bf16/f16); arithmetic stays in f32.
        d = pred_ref[...].astype(jnp.float32) - targ_ref[...].astype(jnp.float32)
        v = jnp.sqrt(d * d + eps2)

        if needs_mask:
            # Only the last (partial) tile pays for iota/compare/select; every other
            # tile runs the pure streaming path.
            @pl.when(i != last)
            def _():
                _accumulate(acc_ref, v)

            @pl.when(i == last)
            def _():
                # Out-of-bounds rows of the partial last block may hold garbage (even
                # NaN/Inf); jnp.where select semantics replace them with 0 regardless.
                row_ids = lax.broadcasted_iota(jnp.int32, (tile_rows, _LANES), 0)
                _accumulate(acc_ref, jnp.where(row_ids < valid_rows_last, v, 0.0))
        else:
            _accumulate(acc_ref, v)

        @pl.when(i == last)
        def _():
            out_ref[0, 0] = jnp.sum(acc_ref[...])

    return kernel


@functools.partial(jax.jit, static_argnames=("epsilon", "max_tile_rows"))
def charbonnier_loss(pred: jax.Array, target: jax.Array,
                     epsilon: float = _EPSILON,
                     max_tile_rows: int = _MAX_TILE_ROWS) -> jax.Array:
    assert pred.shape == target.shape, "pred/target shapes must match"
    n = pred.size
    eps2 = float(epsilon) * float(epsilon)

    p = pred.reshape(-1)
    t = target.reshape(-1)

    rows_main = n // _LANES
    n_main = rows_main * _LANES

    # <=127-element lane tail: tiny plain-jnp correction (avoids a full-array jnp.pad,
    # which would copy both inputs through HBM) and lets the kernel skip lane masking.
    if n_main < n:
        dt = p[n_main:].astype(jnp.float32) - t[n_main:].astype(jnp.float32)
        tail_sum = jnp.sum(jnp.sqrt(dt * dt + eps2))
    else:
        tail_sum = jnp.float32(0.0)

    if rows_main == 0:
        # Fewer than 128 elements total: nothing for the kernel to do.
        return tail_sum / jnp.float32(n)

    # Lane-dense (rows, 128) views of the main body (no copies: contiguous reshape/slice,
    # fused under jit). Native dtype is passed through; upcast happens in-kernel.
    p2d = p[:n_main].reshape(rows_main, _LANES)
    t2d = t[:n_main].reshape(rows_main, _LANES)

    if rows_main <= max_tile_rows:
        tile_rows = rows_main          # full-extent block (always legal)
        num_tiles = 1
    else:
        tile_rows = max_tile_rows
        num_tiles = pl.cdiv(rows_main, tile_rows)
    valid_rows_last = rows_main - (num_tiles - 1) * tile_rows
    acc_rows = 8 if tile_rows % 8 == 0 else 1

    kernel = _make_charbonnier_kernel(eps2, tile_rows, valid_rows_last, acc_rows)

    main_sum = pl.pallas_call(
        kernel,
        out_shape=jax.ShapeDtypeStruct((1, 1), jnp.float32),
        grid_spec=pltpu.PrefetchScalarGridSpec(
            num_scalar_prefetch=0,
            grid=(num_tiles,),
            in_specs=[
                pl.BlockSpec((tile_rows, _LANES), lambda i: (i, 0)),
                pl.BlockSpec((tile_rows, _LANES), lambda i: (i, 0)),
            ],
            out_specs=pl.BlockSpec(
                (1, 1), lambda i: (0, 0), memory_space=pltpu.MemorySpace.SMEM
            ),
            scratch_shapes=[pltpu.VMEM((acc_rows, _LANES), jnp.float32)],
        ),
        compiler_params=pltpu.CompilerParams(
            dimension_semantics=("arbitrary",),
        ),
    )(p2d, t2d)[0, 0]

    return (main_sum + tail_sum) / jnp.float32(n)


def charbonnier_loss_ref(pred, target, epsilon=_EPSILON):
    pred = pred.astype(jnp.float32)
    target = target.astype(jnp.float32)
    return jnp.mean(jnp.sqrt((pred - target) ** 2 + epsilon ** 2))


if __name__ == "__main__":
    key = jax.random.PRNGKey(0)
    k1, k2, k3, k4, k5, k6 = jax.random.split(key, 6)

    # Shape implied by the module (NCHW image-like tensors), lane-aligned.
    pred = jax.random.normal(k1, (2, 4, 16, 16), dtype=jnp.float32)
    target = jax.random.normal(k2, (2, 4, 16, 16), dtype=jnp.float32)
    out = jax.block_until_ready(charbonnier_loss(pred, target))
    ref = charbonnier_loss_ref(pred, target)
    assert jnp.allclose(out, ref, rtol=1e-5, atol=1e-6), (out, ref)

    # Non-lane-aligned shape + non-default epsilon: exercises the wrapper tail
    # correction and the epsilon closure.
    pred2 = jax.random.normal(k3, (3, 5, 7, 11), dtype=jnp.float32)
    target2 = jax.random.normal(k4, (3, 5, 7, 11), dtype=jnp.float32)
    out2 = jax.block_until_ready(charbonnier_loss(pred2, target2, epsilon=1e-3))
    ref2 = charbonnier_loss_ref(pred2, target2, epsilon=1e-3)
    assert jnp.allclose(out2, ref2, rtol=1e-5, atol=1e-6), (out2, ref2)

    # Small shape with an artificially small tile cap: exercises the multi-tile path
    # with last-tile-only row masking plus a lane tail.
    pred3 = jax.random.normal(k5, (3, 5, 7, 13), dtype=jnp.float32)
    target3 = jax.random.normal(k6, (3, 5, 7, 13), dtype=jnp.float32)
    out3 = jax.block_until_ready(charbonnier_loss(pred3, target3, max_tile_rows=8))
    ref3 = charbonnier_loss_ref(pred3, target3)
    assert jnp.allclose(out3, ref3, rtol=1e-5, atol=1e-6), (out3, ref3)

    print("KERNEL_OK")
</pallas_src>

<mosaic_0001>
module attributes {stable_mosaic.version = 11 : i64} {
  func.func @kernel(%arg0: i32, %arg1: memref<16x128xf32, #tpu.memory_space<vmem>>, %arg2: memref<16x128xf32, #tpu.memory_space<vmem>>, %arg3: memref<1x1xf32, #tpu.memory_space<smem>>, %arg4: memref<8x128xf32, #tpu.memory_space<vmem>>) attributes {dimension_semantics = [#tpu.dimension_semantics<arbitrary>], iteration_bounds = array<i64: 1>, scalar_prefetch = 0 : i64, scratch_operands = 1 : i64, tpu.core_type = #tpu.core_type<tc>, window_params = [{transform_indices = @transform_0, window_bounds = array<i64: 16, 128>}, {transform_indices = @transform_1, window_bounds = array<i64: 16, 128>}, {transform_indices = @transform_2, window_bounds = array<i64: 1, 1>}]} {
    %c0_i32 = arith.constant 0 : i32
    %0 = arith.cmpi eq, %arg0, %c0_i32 : i32
    %1 = arith.extui %0 : i1 to i32
    %c0_i32_0 = arith.constant 0 : i32
    %2 = arith.cmpi ne, %1, %c0_i32_0 : i32
    scf.if %2 {
      %cst_11 = arith.constant 0.000000e+00 : f32
      %18 = vector.broadcast %cst_11 : f32 to vector<8x128xf32>
      %c0_12 = arith.constant 0 : index
      %c0_13 = arith.constant 0 : index
      %19 = vector.load %arg4[%c0_12, %c0_13] : memref<8x128xf32, #tpu.memory_space<vmem>>, vector<8x128xf32>
      tpu.vector_store %arg4[%c0_12, %c0_13], %18 {strides = array<i32>} : memref<8x128xf32, #tpu.memory_space<vmem>>, vector<8x128xf32>,
    } else {
    }
    %c0 = arith.constant 0 : index
    %c0_1 = arith.constant 0 : index
    %3 = vector.load %arg1[%c0, %c0_1] : memref<16x128xf32, #tpu.memory_space<vmem>>, vector<16x128xf32>
    %c0_2 = arith.constant 0 : index
    %c0_3 = arith.constant 0 : index
    %4 = vector.load %arg2[%c0_2, %c0_3] : memref<16x128xf32, #tpu.memory_space<vmem>>, vector<16x128xf32>
    %5 = arith.subf %3, %4 : vector<16x128xf32>
    %6 = arith.mulf %5, %5 : vector<16x128xf32>
    %cst = arith.constant 9.99999996E-13 : f32
    %7 = vector.broadcast %cst : f32 to vector<16x128xf32>
    %8 = arith.addf %6, %7 : vector<16x128xf32>
    %9 = math.sqrt %8 : vector<16x128xf32>
    %c0_4 = arith.constant 0 : index
    %c0_5 = arith.constant 0 : index
    %10 = vector.load %arg4[%c0_4, %c0_5] : memref<8x128xf32, #tpu.memory_space<vmem>>, vector<8x128xf32>
    %11 = vector.shape_cast %9 : vector<16x128xf32> to vector<2x8x128xf32>
    %cst_6 = arith.constant dense<0.000000e+00> : vector<8x128xf32>
    %12 = vector.multi_reduction <add>, %11, %cst_6 [0] : vector<2x8x128xf32> to vector<8x128xf32>
    %13 = arith.addf %10, %12 : vector<8x128xf32>
    %c0_7 = arith.constant 0 : index
    %c0_8 = arith.constant 0 : index
    %14 = vector.load %arg4[%c0_7, %c0_8] : memref<8x128xf32, #tpu.memory_space<vmem>>, vector<8x128xf32>
    tpu.vector_store %arg4[%c0_7, %c0_8], %13 {strides = array<i32>} : memref<8x128xf32, #tpu.memory_space<vmem>>, vector<8x128xf32>,
    %c0_i32_9 = arith.constant 0 : i32
    %15 = arith.cmpi eq, %arg0, %c0_i32_9 : i32
    %16 = arith.extui %15 : i1 to i32
    %c0_i32_10 = arith.constant 0 : i32
    %17 = arith.cmpi ne, %16, %c0_i32_10 : i32
    scf.if %17 {
      %c0_11 = arith.constant 0 : index
      %c0_12 = arith.constant 0 : index
      %18 = vector.load %arg4[%c0_11, %c0_12] : memref<8x128xf32, #tpu.memory_space<vmem>>, vector<8x128xf32>
      %19 = vector.shape_cast %18 : vector<8x128xf32> to vector<1x8x128xf32>
      %cst_13 = arith.constant dense<0.000000e+00> : vector<1xf32>
      %20 = vector.multi_reduction <add>, %19, %cst_13 [1, 2] : vector<1x8x128xf32> to vector<1xf32>
      %21 = vector.shape_cast %20 : vector<1xf32> to vector<1x1x1xf32>
      %22 = vector.extract %21[0, 0, 0] : f32 from vector<1x1x1xf32>
      %c0_14 = arith.constant 0 : index
      %c0_15 = arith.constant 0 : index
      %23 = memref.load %arg3[%c0_14, %c0_15] : memref<1x1xf32, #tpu.memory_space<smem>>
      memref.store %22, %arg3[%c0_14, %c0_15] : memref<1x1xf32, #tpu.memory_space<smem>>
    } else {
    }
    return
  }
  func.func @transform_0(%arg0: i32) -> (i32, i32) {
    %c0_i32 = arith.constant 0 : i32
    %c0_i32_0 = arith.constant 0 : i32
    return %arg0, %c0_i32 : i32, i32
  }
  func.func @transform_1(%arg0: i32) -> (i32, i32) {
    %c0_i32 = arith.constant 0 : i32
    %c0_i32_0 = arith.constant 0 : i32
    return %arg0, %c0_i32 : i32, i32
  }
  func.func @transform_2(%arg0: i32) -> (i32, i32) {
    %c0_i32 = arith.constant 0 : i32
    %c0_i32_0 = arith.constant 0 : i32
    %c0_i32_1 = arith.constant 0 : i32
    return %c0_i32, %c0_i32_0 : i32, i32
  }
}

</mosaic_0001>

<llo_original>
// kernel: charbonnier_loss.1
$region0: #{charbonnier_loss.1}
  #allocation0 [shape = 'u32[]', space=smem, size = 0x4, offset = 0x4, fixed_abs, tag = 'smem constant byte address 0x4 - core index']
  #allocation1 [shape = 'u32[72,128]{1,0:T(1,128)}', space=vmem, size = 0x9000, scoped, tag = 'internal scratch']
  #allocation2 [shape = 'f32[8,128]{1,0:T(8,128)}', space=vmem, size = 0x1000, scoped, tag = 'scratch operand']
  %s0 = inlined_call_operand.vmem [shape: f32[16,128], index: 0, kind: input, shape index: {}]
  %s1 = inlined_call_operand.vmem [shape: f32[16,128], index: 1, kind: input, shape index: {}]
  %s2 = inlined_call_operand.hbm [shape: f32[1,1], index: 2, kind: output, shape index: {}]
  %s3 = sld [smem:[#allocation0]]
  $region26: #{charbonnier_loss.1} parent=0
    _
  %s5 = ssub.s32 1, %s3
  %s6 = scalar_select 0, %s5, %s3
  $region1: #{charbonnier_loss.1} parent=0
    #allocation3 [shape = 'u8[512]{0}', space=smem, size = 0x200, scoped, tag = 'output window, operand 0, single buffered']
    #allocation4 [shape = 's32[1]{0}', space=sflag, size = 0x4, scoped, tag = 'scoped memory for charbonnier_loss.1']
    %7 = vsyncpa [#allocation4], 0
    // Predicated region
    $region2: #{charbonnier_loss.1} parent=1 // pred_check
      _
    $region3: #{charbonnier_loss.1} parent=1 // pred_check_branch
      %9 = sbr.rel (0) target = $region5
    $region4: #{charbonnier_loss.1} parent=1 // pred_region
      _
    $region5: #{charbonnier_loss.1} parent=1 // pred_fallthru
      _
    // Predicated region
    $region6: #{charbonnier_loss.1} parent=1 // pred_check
      _
    $region7: #{charbonnier_loss.1} parent=1 // pred_check_branch
      %11 = sbr.rel (0) target = $region9
    $region8: #{charbonnier_loss.1} parent=1 // pred_region
      _
    $region9: #{charbonnier_loss.1} parent=1 // pred_fallthru
      _
    %p12 = scmp.eq.s32.totalorder 0, 0
    // Predicated region
    $region10: #{charbonnier_loss.1} parent=1 // pred_check
      %p13 = pneg %p12
    $region11: #{charbonnier_loss.1} parent=1 // pred_check_branch
      %15 = sbr.rel (%p13) target = $region13
    $region12: #{charbonnier_loss.1} parent=1 // pred_region
      %16 = vst [vmem:[#allocation2] sm:$0xff] 0.0
    $region13: #{charbonnier_loss.1} parent=1 // pred_fallthru
      _
    %v17 = vld [vmem:[%s0] sm:$0xff]
    %v18 = vld [vmem:[%s0 + $0x8] sm:$0xff]
    %v19 = vld [vmem:[%s1] sm:$0xff]
    %v20 = vld [vmem:[%s1 + $0x8] sm:$0xff]
    %v21 = vsub.f32 %v17, %v19
    %v22 = vsub.f32 %v18, %v20
    %v23 = vmul.f32 %v21, %v21
    %v24 = vmul.f32 %v22, %v22
    %v25 = vadd.f32 %v23, 1e-12
    %v26 = vadd.f32 %v24, 1e-12
    %v27 = vrsqrt.pop %v25
    %v28 = vmul.f32 %v27, %v25
    %v29 = vmul.f32 %v28, %v27
    %v30 = vmul.f32 0.5, %v29
    %v31 = vsub.f32 1.5, %v30
    %v32 = vmul.f32 %v27, %v31
    %v33 = vmul.f32 %v25, %v32
    %vm34 = vcmp.eq.f32.partialorder %v25, inf
    %v35 = vsel %vm34, %v25, %v33
    %vm36 = vcmp.eq.f32.partialorder %v25, 0.0
    %v37 = vand.u32 %v25, 2147483648
    %v38 = vsel %vm36, %v37, %v35
    %v39 = vrsqrt.pop %v26
    %v40 = vmul.f32 %v39, %v26
    %v41 = vmul.f32 %v40, %v39
    %v42 = vmul.f32 0.5, %v41
    %v43 = vsub.f32 1.5, %v42
    %v44 = vmul.f32 %v39, %v43
    %v45 = vmul.f32 %v26, %v44
    %vm46 = vcmp.eq.f32.partialorder %v26, inf
    %v47 = vsel %vm46, %v26, %v45
    %vm48 = vcmp.eq.f32.partialorder %v26, 0.0
    %v49 = vand.u32 %v26, 2147483648
    %v50 = vsel %vm48, %v49, %v47
    %v51 = vld [vmem:[#allocation2] sm:$0xff]
    %v52 = vadd.f32 %v38, %v50
    %v53 = vadd.f32 %v51, %v52
    %54 = vst [vmem:[#allocation2] sm:$0xff] %v53
    // Predicated region
    $region14: #{charbonnier_loss.1} parent=1 // pred_check
      %p55 = pneg %p12
    $region15: #{charbonnier_loss.1} parent=1 // pred_check_branch
      %57 = sbr.rel (%p55) target = $region17
    $region16: #{charbonnier_loss.1} parent=1 // pred_region
      %v58 = vld [vmem:[#allocation2] sm:$0xff]
      %59 = vadd.xlane.f32.xlu0 %v58
      %v60 = vpop.xlane.xlu0 %59
      %v61 = vrot.slane %v60, 4
      %v62 = vadd.f32 %v60, %v61
      %v63 = vrot.slane %v62, 2
      %v64 = vadd.f32 %v62, %v63
      %v65 = vrot.slane %v64, 1
      %v66 = vadd.f32 %v64, %v65
      %s67 = vtos %v66
      %s68 = scalar_lea.smem [#allocation3], 0
      %69 = sst [smem:[%s68]] %s67
    $region17: #{charbonnier_loss.1} parent=1 // pred_fallthru
      _
    // Predicated region
    $region18: #{charbonnier_loss.1} parent=1 // pred_check
      _
    $region19: #{charbonnier_loss.1} parent=1 // pred_check_branch
      %71 = sbr.rel (0) target = $region21
    $region20: #{charbonnier_loss.1} parent=1 // pred_region
      %73 = vsyncadd [#allocation4], 0
      %s75 = sshll.u32 %s2, 4
      %s76 = int_to_ptr.hbm [resolvable:$true] %s75
      %78 = dma.smem_to_hbm [#allocation3], 16, %s76, [#allocation4]
    $region21: #{charbonnier_loss.1} parent=1 // pred_fallthru
      _
    // Predicated region
    $region22: #{charbonnier_loss.1} parent=1 // pred_check
      _
    $region23: #{charbonnier_loss.1} parent=1 // pred_check_branch
      %80 = sbr.rel (0) target = $region25
    $region24: #{charbonnier_loss.1} parent=1 // pred_region
      %82 = dma.done [#allocation4], 16
    $region25: #{charbonnier_loss.1} parent=1 // pred_fallthru
      _
    %83 = sfence
    %84 = vsyncpa [#allocation4], 1

</llo_original>
